<compile_context>
chip_gen: v7x
topology: tpu7x:2x2x1
jax: 0.10.0
libtpu: 0.0.40
codegen_flags: <defaults>
</compile_context>

<pallas_src>
import functools

import jax
import jax.numpy as jnp
from jax.experimental import pallas as pl
from jax.experimental.pallas import tpu as pltpu


def _residual_block_kernel(x_ref, w1_ref, g1_ref, b1_ref, w2_ref, g2_ref,
                           b2_ref, out_ref, pad_ref, taps_ref, *, H, W):
    # x_ref:    (1, C, H*W)          VMEM  input image, flattened spatial
    # w*_ref:   (C, KP)              VMEM  conv weights, col = (kh*3+kw)*C + ci
    # g*/b*:    (C, 1)               VMEM  InstanceNorm affine params
    # out_ref:  (1, C, H*W)          VMEM
    # pad_ref:  (C, H*W + 2*PAD) f32 VMEM  flat zero-padded plane scratch
    # taps_ref: (KP, H*W)        f32 VMEM  im2col tap matrix scratch
    C = x_ref.shape[1]
    HW = H * W
    PAD = (pad_ref.shape[1] - HW) // 2
    K9 = 9 * C
    KP = taps_ref.shape[0]
    eps = 1e-5
    inv_hw = 1.0 / HW

    # Column index of every flattened spatial position (computed once, reused
    # by both convs).  Only the left/right column wrap needs masking; the
    # top/bottom halo is covered by the zero pad slabs of pad_ref.
    col = jax.lax.broadcasted_iota(jnp.int32, (C, HW), 1) % W
    mask_l = col >= 1          # taps with ow == -1
    mask_r = col <= W - 2      # taps with ow == +1

    # Zero the pad slabs (lane-aligned, tiny).  Interior is overwritten below.
    zeros_pad = jnp.zeros((C, PAD), jnp.float32)
    pad_ref[:, 0:PAD] = zeros_pad
    pad_ref[:, PAD + HW:2 * PAD + HW] = zeros_pad
    if KP > K9:  # zero the K-padding rows of the tap matrix (static branch)
        taps_ref[K9:KP, :] = jnp.zeros((KP - K9, HW), jnp.float32)

    def conv3x3_instnorm(w_ref, g_ref, b_ref):
        # im2col: 9 shifted copies of the (C, HW) plane currently held in the
        # interior of pad_ref, stacked into the (9*C, HW) tap matrix.
        for k in range(9):
            oh, ow = k // 3 - 1, k % 3 - 1
            start = PAD + oh * W + ow
            t = pad_ref[:, start:start + HW]
            if ow == -1:
                t = jnp.where(mask_l, t, 0.0)
            elif ow == 1:
                t = jnp.where(mask_r, t, 0.0)
            taps_ref[k * C:(k + 1) * C, :] = t
        # Channel contraction on the MXU; result stays lane-dense (C, HW).
        acc = jnp.dot(w_ref[...], taps_ref[...],
                      preferred_element_type=jnp.float32)
        # InstanceNorm (training-mode, biased variance), fused one-pass stats.
        s1 = jnp.sum(acc, axis=-1, keepdims=True)
        s2 = jnp.sum(acc * acc, axis=-1, keepdims=True)
        mean = s1 * inv_hw
        var = jnp.maximum(s2 * inv_hw - mean * mean, 0.0)
        return (acc - mean) * jax.lax.rsqrt(var + eps) * g_ref[...] + b_ref[...]

    x = x_ref[0].astype(jnp.float32)                     # (C, HW)

    # ---- conv1 (3x3, pad 1, no bias) + InstanceNorm1 + ReLU ----
    pad_ref[:, PAD:PAD + HW] = x
    h = jnp.maximum(conv3x3_instnorm(w1_ref, g1_ref, b1_ref), 0.0)

    # ---- conv2 (3x3, pad 1, no bias) + InstanceNorm2 + residual add ----
    pad_ref[:, PAD:PAD + HW] = h
    y = conv3x3_instnorm(w2_ref, g2_ref, b2_ref)

    out_ref[0] = (x + y).astype(out_ref.dtype)


def residual_block(x, w1, g1, b1, w2, g2, b2):
    """x: (N, C, H, W) float32; w*: (C, C, 3, 3); g*/b*: (C,)."""
    N, C, H, W = x.shape
    HW = H * W
    PAD = ((W + 1 + 127) // 128) * 128      # >= W+1, keeps interior lane-aligned
    KP = ((9 * C + 7) // 8) * 8             # tap-matrix K padded to sublane tile

    # Layout plumbing (outside the kernel): flatten spatial dims so the kernel
    # sees a lane-dense (C, H*W) slab; rearrange conv weights to (C_out, 9*C_in)
    # matching the tap-matrix row order, then zero-pad K to KP.
    x_flat = x.reshape(N, C, HW)
    w1r = jnp.pad(jnp.transpose(w1, (0, 2, 3, 1)).reshape(C, 9 * C),
                  ((0, 0), (0, KP - 9 * C)))
    w2r = jnp.pad(jnp.transpose(w2, (0, 2, 3, 1)).reshape(C, 9 * C),
                  ((0, 0), (0, KP - 9 * C)))
    g1c, b1c = g1.reshape(C, 1), b1.reshape(C, 1)
    g2c, b2c = g2.reshape(C, 1), b2.reshape(C, 1)

    kernel = functools.partial(_residual_block_kernel, H=H, W=W)

    def const_spec(shape):
        return pl.BlockSpec(shape, lambda n: (0, 0))

    out_flat = pl.pallas_call(
        kernel,
        out_shape=jax.ShapeDtypeStruct((N, C, HW), x.dtype),
        grid_spec=pltpu.PrefetchScalarGridSpec(
            num_scalar_prefetch=0,
            grid=(N,),
            in_specs=[
                pl.BlockSpec((1, C, HW), lambda n: (n, 0, 0)),
                const_spec((C, KP)),
                const_spec((C, 1)),
                const_spec((C, 1)),
                const_spec((C, KP)),
                const_spec((C, 1)),
                const_spec((C, 1)),
            ],
            out_specs=pl.BlockSpec((1, C, HW), lambda n: (n, 0, 0)),
            scratch_shapes=[
                pltpu.VMEM((C, HW + 2 * PAD), jnp.float32),
                pltpu.VMEM((KP, HW), jnp.float32),
            ],
        ),
        compiler_params=pltpu.CompilerParams(
            dimension_semantics=("parallel",)),
    )(x_flat, w1r, g1c, b1c, w2r, g2c, b2c)
    return out_flat.reshape(N, C, H, W)


# ----------------------------- pure-JAX reference -----------------------------
def _conv3x3_ref(x, w):
    return jax.lax.conv_general_dilated(
        x, w, window_strides=(1, 1), padding="SAME",
        dimension_numbers=("NCHW", "OIHW", "NCHW"))


def _instance_norm_ref(x, g, b, eps=1e-5):
    mean = jnp.mean(x, axis=(2, 3), keepdims=True)
    var = jnp.mean((x - mean) ** 2, axis=(2, 3), keepdims=True)
    return (x - mean) * jax.lax.rsqrt(var + eps) * g[None, :, None, None] \
        + b[None, :, None, None]


def _residual_block_ref(x, w1, g1, b1, w2, g2, b2):
    h = _conv3x3_ref(x, w1)
    h = _instance_norm_ref(h, g1, b1)
    h = jnp.maximum(h, 0.0)
    h = _conv3x3_ref(h, w2)
    h = _instance_norm_ref(h, g2, b2)
    return x + h


if __name__ == "__main__":
    N, C, H, W = 2, 4, 16, 16
    key = jax.random.PRNGKey(0)
    kx, kw1, kw2, kg1, kb1, kg2, kb2 = jax.random.split(key, 7)

    x = jax.random.normal(kx, (N, C, H, W), jnp.float32)
    scale = (1.0 / (C * 9)) ** 0.5
    w1 = scale * jax.random.normal(kw1, (C, C, 3, 3), jnp.float32)
    w2 = scale * jax.random.normal(kw2, (C, C, 3, 3), jnp.float32)
    g1 = 1.0 + 0.1 * jax.random.normal(kg1, (C,), jnp.float32)
    b1 = 0.1 * jax.random.normal(kb1, (C,), jnp.float32)
    g2 = 1.0 + 0.1 * jax.random.normal(kg2, (C,), jnp.float32)
    b2 = 0.1 * jax.random.normal(kb2, (C,), jnp.float32)

    out = jax.block_until_ready(residual_block(x, w1, g1, b1, w2, g2, b2))
    ref = jax.block_until_ready(_residual_block_ref(x, w1, g1, b1, w2, g2, b2))

    assert out.shape == (N, C, H, W) and out.dtype == jnp.float32
    if not jnp.allclose(out, ref, atol=1e-4, rtol=1e-4):
        raise AssertionError(
            f"mismatch vs reference: max abs err {float(jnp.max(jnp.abs(out - ref)))}")
    print("KERNEL_OK")
</pallas_src>

<mosaic_0001>
module attributes {stable_mosaic.version = 11 : i64} {
  func.func @_residual_block_kernel(%arg0: i32, %arg1: memref<1x4x256xf32, #tpu.memory_space<vmem>>, %arg2: memref<4x40xf32, #tpu.memory_space<vmem>>, %arg3: memref<4x1xf32, #tpu.memory_space<vmem>>, %arg4: memref<4x1xf32, #tpu.memory_space<vmem>>, %arg5: memref<4x40xf32, #tpu.memory_space<vmem>>, %arg6: memref<4x1xf32, #tpu.memory_space<vmem>>, %arg7: memref<4x1xf32, #tpu.memory_space<vmem>>, %arg8: memref<1x4x256xf32, #tpu.memory_space<vmem>>, %arg9: memref<4x512xf32, #tpu.memory_space<vmem>>, %arg10: memref<40x256xf32, #tpu.memory_space<vmem>>) attributes {dimension_semantics = [#tpu.dimension_semantics<parallel>], iteration_bounds = array<i64: 2>, scalar_prefetch = 0 : i64, scratch_operands = 2 : i64, tpu.core_type = #tpu.core_type<tc>, window_params = [{transform_indices = @transform_0, window_bounds = array<i64: 1, 4, 256>}, {pipeline_mode = #tpu.pipeline_mode<synchronous>, transform_indices = @transform_1, window_bounds = array<i64: 4, 40>}, {pipeline_mode = #tpu.pipeline_mode<synchronous>, transform_indices = @transform_2, window_bounds = array<i64: 4, 1>}, {pipeline_mode = #tpu.pipeline_mode<synchronous>, transform_indices = @transform_3, window_bounds = array<i64: 4, 1>}, {pipeline_mode = #tpu.pipeline_mode<synchronous>, transform_indices = @transform_4, window_bounds = array<i64: 4, 40>}, {pipeline_mode = #tpu.pipeline_mode<synchronous>, transform_indices = @transform_5, window_bounds = array<i64: 4, 1>}, {pipeline_mode = #tpu.pipeline_mode<synchronous>, transform_indices = @transform_6, window_bounds = array<i64: 4, 1>}, {transform_indices = @transform_7, window_bounds = array<i64: 1, 4, 256>}]} {
    %0 = tpu.iota {dimensions = array<i32: 1>} : vector<4x256xi32>
    %c16_i32 = arith.constant 16 : i32
    %c0_i32 = arith.constant 0 : i32
    %1 = arith.cmpi eq, %c16_i32, %c0_i32 : i32
    %c1_i32 = arith.constant 1 : i32
    %2 = arith.select %1, %c1_i32, %c16_i32 : i32
    %3 = vector.broadcast %2 : i32 to vector<4x256xi32>
    %4 = arith.remsi %0, %3 : vector<4x256xi32>
    %c0_i32_0 = arith.constant 0 : i32
    %5 = vector.broadcast %c0_i32_0 : i32 to vector<4x256xi32>
    %6 = arith.cmpi ne, %4, %5 : vector<4x256xi32>
    %c0_i32_1 = arith.constant 0 : i32
    %7 = vector.broadcast %c0_i32_1 : i32 to vector<4x256xi32>
    %8 = arith.cmpi slt, %4, %7 : vector<4x256xi32>
    %c0_i32_2 = arith.constant 0 : i32
    %9 = arith.cmpi slt, %2, %c0_i32_2 : i32
    %10 = vector.broadcast %9 : i1 to vector<4x256xi1>
    %11 = vector.broadcast %10 : vector<4x256xi1> to vector<4x256xi1>
    %12 = arith.xori %8, %11 : vector<4x256xi1>
    %13 = arith.andi %12, %6 : vector<4x256xi1>
    %14 = vector.broadcast %2 : i32 to vector<4x256xi32>
    %15 = arith.addi %4, %14 : vector<4x256xi32>
    %16 = arith.select %13, %15, %4 : vector<4x256xi1>, vector<4x256xi32>
    %c1_i32_3 = arith.constant 1 : i32
    %17 = vector.broadcast %c1_i32_3 : i32 to vector<4x256xi32>
    %18 = arith.cmpi sge, %16, %17 : vector<4x256xi32>
    %c14_i32 = arith.constant 14 : i32
    %19 = vector.broadcast %c14_i32 : i32 to vector<4x256xi32>
    %20 = arith.cmpi sle, %16, %19 : vector<4x256xi32>
    %cst = arith.constant 0.000000e+00 : f32
    %21 = vector.broadcast %cst : f32 to vector<4x128xf32>
    %c0 = arith.constant 0 : index
    %c0_4 = arith.constant 0 : index
    %22 = vector.load %arg9[%c0, %c0_4] : memref<4x512xf32, #tpu.memory_space<vmem>>, vector<4x128xf32>
    tpu.vector_store %arg9[%c0, %c0_4], %21 {strides = array<i32>} : memref<4x512xf32, #tpu.memory_space<vmem>>, vector<4x128xf32>,
    %c0_5 = arith.constant 0 : index
    %c384 = arith.constant 384 : index
    %23 = vector.load %arg9[%c0_5, %c384] : memref<4x512xf32, #tpu.memory_space<vmem>>, vector<4x128xf32>
    tpu.vector_store %arg9[%c0_5, %c384], %21 {strides = array<i32>} : memref<4x512xf32, #tpu.memory_space<vmem>>, vector<4x128xf32>,
    %cst_6 = arith.constant 0.000000e+00 : f32
    %24 = vector.broadcast %cst_6 : f32 to vector<4x256xf32>
    %c36 = arith.constant 36 : index
    %c0_7 = arith.constant 0 : index
    %25 = vector.load %arg10[%c36, %c0_7] : memref<40x256xf32, #tpu.memory_space<vmem>>, vector<4x256xf32>
    tpu.vector_store %arg10[%c36, %c0_7], %24 {strides = array<i32>} : memref<40x256xf32, #tpu.memory_space<vmem>>, vector<4x256xf32>,
    %c0_8 = arith.constant 0 : index
    %c0_9 = arith.constant 0 : index
    %c0_10 = arith.constant 0 : index
    %26 = vector.load %arg1[%c0_8, %c0_9, %c0_10] : memref<1x4x256xf32, #tpu.memory_space<vmem>>, vector<1x4x256xf32>
    %27 = vector.shape_cast %26 : vector<1x4x256xf32> to vector<4x256xf32>
    %c0_11 = arith.constant 0 : index
    %c128 = arith.constant 128 : index
    %28 = vector.load %arg9[%c0_11, %c128] : memref<4x512xf32, #tpu.memory_space<vmem>>, vector<4x256xf32>
    tpu.vector_store %arg9[%c0_11, %c128], %27 {strides = array<i32>} : memref<4x512xf32, #tpu.memory_space<vmem>>, vector<4x256xf32>,
    %c0_12 = arith.constant 0 : index
    %c111 = arith.constant 111 : index
    %29 = vector.load %arg9[%c0_12, %c111] : memref<4x512xf32, #tpu.memory_space<vmem>>, vector<4x256xf32>
    %cst_13 = arith.constant 0.000000e+00 : f32
    %30 = vector.broadcast %cst_13 : f32 to vector<4x256xf32>
    %31 = arith.select %18, %29, %30 : vector<4x256xi1>, vector<4x256xf32>
    %c0_14 = arith.constant 0 : index
    %c0_15 = arith.constant 0 : index
    %32 = vector.load %arg10[%c0_14, %c0_15] : memref<40x256xf32, #tpu.memory_space<vmem>>, vector<4x256xf32>
    tpu.vector_store %arg10[%c0_14, %c0_15], %31 {strides = array<i32>} : memref<40x256xf32, #tpu.memory_space<vmem>>, vector<4x256xf32>,
    %c0_16 = arith.constant 0 : index
    %c112 = arith.constant 112 : index
    %33 = vector.load %arg9[%c0_16, %c112] : memref<4x512xf32, #tpu.memory_space<vmem>>, vector<4x256xf32>
    %c4 = arith.constant 4 : index
    %c0_17 = arith.constant 0 : index
    %34 = vector.load %arg10[%c4, %c0_17] : memref<40x256xf32, #tpu.memory_space<vmem>>, vector<4x256xf32>
    tpu.vector_store %arg10[%c4, %c0_17], %33 {strides = array<i32>} : memref<40x256xf32, #tpu.memory_space<vmem>>, vector<4x256xf32>,
    %c0_18 = arith.constant 0 : index
    %c113 = arith.constant 113 : index
    %35 = vector.load %arg9[%c0_18, %c113] : memref<4x512xf32, #tpu.memory_space<vmem>>, vector<4x256xf32>
    %cst_19 = arith.constant 0.000000e+00 : f32
    %36 = vector.broadcast %cst_19 : f32 to vector<4x256xf32>
    %37 = arith.select %20, %35, %36 : vector<4x256xi1>, vector<4x256xf32>
    %c8 = arith.constant 8 : index
    %c0_20 = arith.constant 0 : index
    %38 = vector.load %arg10[%c8, %c0_20] : memref<40x256xf32, #tpu.memory_space<vmem>>, vector<4x256xf32>
    tpu.vector_store %arg10[%c8, %c0_20], %37 {strides = array<i32>} : memref<40x256xf32, #tpu.memory_space<vmem>>, vector<4x256xf32>,
    %c0_21 = arith.constant 0 : index
    %c127 = arith.constant 127 : index
    %39 = vector.load %arg9[%c0_21, %c127] : memref<4x512xf32, #tpu.memory_space<vmem>>, vector<4x256xf32>
    %cst_22 = arith.constant 0.000000e+00 : f32
    %40 = vector.broadcast %cst_22 : f32 to vector<4x256xf32>
    %41 = arith.select %18, %39, %40 : vector<4x256xi1>, vector<4x256xf32>
    %c12 = arith.constant 12 : index
    %c0_23 = arith.constant 0 : index
    %42 = vector.load %arg10[%c12, %c0_23] : memref<40x256xf32, #tpu.memory_space<vmem>>, vector<4x256xf32>
    tpu.vector_store %arg10[%c12, %c0_23], %41 {strides = array<i32>} : memref<40x256xf32, #tpu.memory_space<vmem>>, vector<4x256xf32>,
    %c0_24 = arith.constant 0 : index
    %c128_25 = arith.constant 128 : index
    %43 = vector.load %arg9[%c0_24, %c128_25] : memref<4x512xf32, #tpu.memory_space<vmem>>, vector<4x256xf32>
    %c16 = arith.constant 16 : index
    %c0_26 = arith.constant 0 : index
    %44 = vector.load %arg10[%c16, %c0_26] : memref<40x256xf32, #tpu.memory_space<vmem>>, vector<4x256xf32>
    tpu.vector_store %arg10[%c16, %c0_26], %43 {strides = array<i32>} : memref<40x256xf32, #tpu.memory_space<vmem>>, vector<4x256xf32>,
    %c0_27 = arith.constant 0 : index
    %c129 = arith.constant 129 : index
    %45 = vector.load %arg9[%c0_27, %c129] : memref<4x512xf32, #tpu.memory_space<vmem>>, vector<4x256xf32>
    %cst_28 = arith.constant 0.000000e+00 : f32
    %46 = vector.broadcast %cst_28 : f32 to vector<4x256xf32>
    %47 = arith.select %20, %45, %46 : vector<4x256xi1>, vector<4x256xf32>
    %c20 = arith.constant 20 : index
    %c0_29 = arith.constant 0 : index
    %48 = vector.load %arg10[%c20, %c0_29] : memref<40x256xf32, #tpu.memory_space<vmem>>, vector<4x256xf32>
    tpu.vector_store %arg10[%c20, %c0_29], %47 {strides = array<i32>} : memref<40x256xf32, #tpu.memory_space<vmem>>, vector<4x256xf32>,
    %c0_30 = arith.constant 0 : index
    %c143 = arith.constant 143 : index
    %49 = vector.load %arg9[%c0_30, %c143] : memref<4x512xf32, #tpu.memory_space<vmem>>, vector<4x256xf32>
    %cst_31 = arith.constant 0.000000e+00 : f32
    %50 = vector.broadcast %cst_31 : f32 to vector<4x256xf32>
    %51 = arith.select %18, %49, %50 : vector<4x256xi1>, vector<4x256xf32>
    %c24 = arith.constant 24 : index
    %c0_32 = arith.constant 0 : index
    %52 = vector.load %arg10[%c24, %c0_32] : memref<40x256xf32, #tpu.memory_space<vmem>>, vector<4x256xf32>
    tpu.vector_store %arg10[%c24, %c0_32], %51 {strides = array<i32>} : memref<40x256xf32, #tpu.memory_space<vmem>>, vector<4x256xf32>,
    %c0_33 = arith.constant 0 : index
    %c144 = arith.constant 144 : index
    %53 = vector.load %arg9[%c0_33, %c144] : memref<4x512xf32, #tpu.memory_space<vmem>>, vector<4x256xf32>
    %c28 = arith.constant 28 : index
    %c0_34 = arith.constant 0 : index
    %54 = vector.load %arg10[%c28, %c0_34] : memref<40x256xf32, #tpu.memory_space<vmem>>, vector<4x256xf32>
    tpu.vector_store %arg10[%c28, %c0_34], %53 {strides = array<i32>} : memref<40x256xf32, #tpu.memory_space<vmem>>, vector<4x256xf32>,
    %c0_35 = arith.constant 0 : index
    %c145 = arith.constant 145 : index
    %55 = vector.load %arg9[%c0_35, %c145] : memref<4x512xf32, #tpu.memory_space<vmem>>, vector<4x256xf32>
    %cst_36 = arith.constant 0.000000e+00 : f32
    %56 = vector.broadcast %cst_36 : f32 to vector<4x256xf32>
    %57 = arith.select %20, %55, %56 : vector<4x256xi1>, vector<4x256xf32>
    %c32 = arith.constant 32 : index
    %c0_37 = arith.constant 0 : index
    %58 = vector.load %arg10[%c32, %c0_37] : memref<40x256xf32, #tpu.memory_space<vmem>>, vector<4x256xf32>
    tpu.vector_store %arg10[%c32, %c0_37], %57 {strides = array<i32>} : memref<40x256xf32, #tpu.memory_space<vmem>>, vector<4x256xf32>,
    %c0_38 = arith.constant 0 : index
    %c0_39 = arith.constant 0 : index
    %59 = vector.load %arg2[%c0_38, %c0_39] : memref<4x40xf32, #tpu.memory_space<vmem>>, vector<4x40xf32>
    %c0_40 = arith.constant 0 : index
    %c0_41 = arith.constant 0 : index
    %60 = vector.load %arg10[%c0_40, %c0_41] : memref<40x256xf32, #tpu.memory_space<vmem>>, vector<40x256xf32>
    %cst_42 = arith.constant dense<0.000000e+00> : vector<4x256xf32>
    %61 = tpu.matmul %59, %60, %cst_42 {dimension_numbers = #tpu.dot_dimension_numbers<[1], [0], [0], [1], [0, 0, 1, 1], [], []>} : vector<4x40xf32>, vector<40x256xf32>, vector<4x256xf32> -> vector<4x256xf32>
    %cst_43 = arith.constant dense<0.000000e+00> : vector<4xf32>
    %62 = vector.multi_reduction <add>, %61, %cst_43 [1] : vector<4x256xf32> to vector<4xf32>
    %63 = vector.shape_cast %62 : vector<4xf32> to vector<4x1xf32>
    %64 = arith.mulf %61, %61 : vector<4x256xf32>
    %cst_44 = arith.constant dense<0.000000e+00> : vector<4xf32>
    %65 = vector.multi_reduction <add>, %64, %cst_44 [1] : vector<4x256xf32> to vector<4xf32>
    %66 = vector.shape_cast %65 : vector<4xf32> to vector<4x1xf32>
    %cst_45 = arith.constant 3.906250e-03 : f32
    %67 = vector.broadcast %cst_45 : f32 to vector<4x1xf32>
    %68 = arith.mulf %63, %67 : vector<4x1xf32>
    %cst_46 = arith.constant 3.906250e-03 : f32
    %69 = vector.broadcast %cst_46 : f32 to vector<4x1xf32>
    %70 = arith.mulf %66, %69 : vector<4x1xf32>
    %71 = arith.mulf %68, %68 : vector<4x1xf32>
    %72 = arith.subf %70, %71 : vector<4x1xf32>
    %cst_47 = arith.constant 0.000000e+00 : f32
    %73 = vector.broadcast %cst_47 : f32 to vector<4x1xf32>
    %74 = arith.maximumf %72, %73 : vector<4x1xf32>
    %75 = vector.broadcast %68 : vector<4x1xf32> to vector<4x256xf32>
    %76 = arith.subf %61, %75 : vector<4x256xf32>
    %cst_48 = arith.constant 9.99999974E-6 : f32
    %77 = vector.broadcast %cst_48 : f32 to vector<4x1xf32>
    %78 = arith.addf %74, %77 : vector<4x1xf32>
    %79 = math.rsqrt %78 : vector<4x1xf32>
    %80 = vector.broadcast %79 : vector<4x1xf32> to vector<4x256xf32>
    %81 = arith.mulf %76, %80 : vector<4x256xf32>
    %c0_49 = arith.constant 0 : index
    %c0_50 = arith.constant 0 : index
    %82 = vector.load %arg3[%c0_49, %c0_50] : memref<4x1xf32, #tpu.memory_space<vmem>>, vector<4x1xf32>
    %83 = vector.broadcast %82 : vector<4x1xf32> to vector<4x256xf32>
    %84 = arith.mulf %81, %83 : vector<4x256xf32>
    %c0_51 = arith.constant 0 : index
    %c0_52 = arith.constant 0 : index
    %85 = vector.load %arg4[%c0_51, %c0_52] : memref<4x1xf32, #tpu.memory_space<vmem>>, vector<4x1xf32>
    %86 = vector.broadcast %85 : vector<4x1xf32> to vector<4x256xf32>
    %87 = arith.addf %84, %86 : vector<4x256xf32>
    %cst_53 = arith.constant 0.000000e+00 : f32
    %88 = vector.broadcast %cst_53 : f32 to vector<4x256xf32>
    %89 = arith.maximumf %87, %88 : vector<4x256xf32>
    %c0_54 = arith.constant 0 : index
    %c128_55 = arith.constant 128 : index
    %90 = vector.load %arg9[%c0_54, %c128_55] : memref<4x512xf32, #tpu.memory_space<vmem>>, vector<4x256xf32>
    tpu.vector_store %arg9[%c0_54, %c128_55], %89 {strides = array<i32>} : memref<4x512xf32, #tpu.memory_space<vmem>>, vector<4x256xf32>,
    %c0_56 = arith.constant 0 : index
    %c111_57 = arith.constant 111 : index
    %91 = vector.load %arg9[%c0_56, %c111_57] : memref<4x512xf32, #tpu.memory_space<vmem>>, vector<4x256xf32>
    %cst_58 = arith.constant 0.000000e+00 : f32
    %92 = vector.broadcast %cst_58 : f32 to vector<4x256xf32>
    %93 = arith.select %18, %91, %92 : vector<4x256xi1>, vector<4x256xf32>
    %c0_59 = arith.constant 0 : index
    %c0_60 = arith.constant 0 : index
    %94 = vector.load %arg10[%c0_59, %c0_60] : memref<40x256xf32, #tpu.memory_space<vmem>>, vector<4x256xf32>
    tpu.vector_store %arg10[%c0_59, %c0_60], %93 {strides = array<i32>} : memref<40x256xf32, #tpu.memory_space<vmem>>, vector<4x256xf32>,
    %c0_61 = arith.constant 0 : index
    %c112_62 = arith.constant 112 : index
    %95 = vector.load %arg9[%c0_61, %c112_62] : memref<4x512xf32, #tpu.memory_space<vmem>>, vector<4x256xf32>
    %c4_63 = arith.constant 4 : index
    %c0_64 = arith.constant 0 : index
    %96 = vector.load %arg10[%c4_63, %c0_64] : memref<40x256xf32, #tpu.memory_space<vmem>>, vector<4x256xf32>
    tpu.vector_store %arg10[%c4_63, %c0_64], %95 {strides = array<i32>} : memref<40x256xf32, #tpu.memory_space<vmem>>, vector<4x256xf32>,
    %c0_65 = arith.constant 0 : index
    %c113_66 = arith.constant 113 : index
    %97 = vector.load %arg9[%c0_65, %c113_66] : memref<4x512xf32, #tpu.memory_space<vmem>>, vector<4x256xf32>
    %cst_67 = arith.constant 0.000000e+00 : f32
    %98 = vector.broadcast %cst_67 : f32 to vector<4x256xf32>
    %99 = arith.select %20, %97, %98 : vector<4x256xi1>, vector<4x256xf32>
    %c8_68 = arith.constant 8 : index
    %c0_69 = arith.constant 0 : index
    %100 = vector.load %arg10[%c8_68, %c0_69] : memref<40x256xf32, #tpu.memory_space<vmem>>, vector<4x256xf32>
    tpu.vector_store %arg10[%c8_68, %c0_69], %99 {strides = array<i32>} : memref<40x256xf32, #tpu.memory_space<vmem>>, vector<4x256xf32>,
    %c0_70 = arith.constant 0 : index
    %c127_71 = arith.constant 127 : index
    %101 = vector.load %arg9[%c0_70, %c127_71] : memref<4x512xf32, #tpu.memory_space<vmem>>, vector<4x256xf32>
    %cst_72 = arith.constant 0.000000e+00 : f32
    %102 = vector.broadcast %cst_72 : f32 to vector<4x256xf32>
    %103 = arith.select %18, %101, %102 : vector<4x256xi1>, vector<4x256xf32>
    %c12_73 = arith.constant 12 : index
    %c0_74 = arith.constant 0 : index
    %104 = vector.load %arg10[%c12_73, %c0_74] : memref<40x256xf32, #tpu.memory_space<vmem>>, vector<4x256xf32>
    tpu.vector_store %arg10[%c12_73, %c0_74], %103 {strides = array<i32>} : memref<40x256xf32, #tpu.memory_space<vmem>>, vector<4x256xf32>,
    %c0_75 = arith.constant 0 : index
    %c128_76 = arith.constant 128 : index
    %105 = vector.load %arg9[%c0_75, %c128_76] : memref<4x512xf32, #tpu.memory_space<vmem>>, vector<4x256xf32>
    %c16_77 = arith.constant 16 : index
    %c0_78 = arith.constant 0 : index
    %106 = vector.load %arg10[%c16_77, %c0_78] : memref<40x256xf32, #tpu.memory_space<vmem>>, vector<4x256xf32>
    tpu.vector_store %arg10[%c16_77, %c0_78], %105 {strides = array<i32>} : memref<40x256xf32, #tpu.memory_space<vmem>>, vector<4x256xf32>,
    %c0_79 = arith.constant 0 : index
    %c129_80 = arith.constant 129 : index
    %107 = vector.load %arg9[%c0_79, %c129_80] : memref<4x512xf32, #tpu.memory_space<vmem>>, vector<4x256xf32>
    %cst_81 = arith.constant 0.000000e+00 : f32
    %108 = vector.broadcast %cst_81 : f32 to vector<4x256xf32>
    %109 = arith.select %20, %107, %108 : vector<4x256xi1>, vector<4x256xf32>
    %c20_82 = arith.constant 20 : index
    %c0_83 = arith.constant 0 : index
    %110 = vector.load %arg10[%c20_82, %c0_83] : memref<40x256xf32, #tpu.memory_space<vmem>>, vector<4x256xf32>
    tpu.vector_store %arg10[%c20_82, %c0_83], %109 {strides = array<i32>} : memref<40x256xf32, #tpu.memory_space<vmem>>, vector<4x256xf32>,
    %c0_84 = arith.constant 0 : index
    %c143_85 = arith.constant 143 : index
    %111 = vector.load %arg9[%c0_84, %c143_85] : memref<4x512xf32, #tpu.memory_space<vmem>>, vector<4x256xf32>
    %cst_86 = arith.constant 0.000000e+00 : f32
    %112 = vector.broadcast %cst_86 : f32 to vector<4x256xf32>
    %113 = arith.select %18, %111, %112 : vector<4x256xi1>, vector<4x256xf32>
    %c24_87 = arith.constant 24 : index
    %c0_88 = arith.constant 0 : index
    %114 = vector.load %arg10[%c24_87, %c0_88] : memref<40x256xf32, #tpu.memory_space<vmem>>, vector<4x256xf32>
    tpu.vector_store %arg10[%c24_87, %c0_88], %113 {strides = array<i32>} : memref<40x256xf32, #tpu.memory_space<vmem>>, vector<4x256xf32>,
    %c0_89 = arith.constant 0 : index
    %c144_90 = arith.constant 144 : index
    %115 = vector.load %arg9[%c0_89, %c144_90] : memref<4x512xf32, #tpu.memory_space<vmem>>, vector<4x256xf32>
    %c28_91 = arith.constant 28 : index
    %c0_92 = arith.constant 0 : index
    %116 = vector.load %arg10[%c28_91, %c0_92] : memref<40x256xf32, #tpu.memory_space<vmem>>, vector<4x256xf32>
    tpu.vector_store %arg10[%c28_91, %c0_92], %115 {strides = array<i32>} : memref<40x256xf32, #tpu.memory_space<vmem>>, vector<4x256xf32>,
    %c0_93 = arith.constant 0 : index
    %c145_94 = arith.constant 145 : index
    %117 = vector.load %arg9[%c0_93, %c145_94] : memref<4x512xf32, #tpu.memory_space<vmem>>, vector<4x256xf32>
    %cst_95 = arith.constant 0.000000e+00 : f32
    %118 = vector.broadcast %cst_95 : f32 to vector<4x256xf32>
    %119 = arith.select %20, %117, %118 : vector<4x256xi1>, vector<4x256xf32>
    %c32_96 = arith.constant 32 : index
    %c0_97 = arith.constant 0 : index
    %120 = vector.load %arg10[%c32_96, %c0_97] : memref<40x256xf32, #tpu.memory_space<vmem>>, vector<4x256xf32>
    tpu.vector_store %arg10[%c32_96, %c0_97], %119 {strides = array<i32>} : memref<40x256xf32, #tpu.memory_space<vmem>>, vector<4x256xf32>,
    %c0_98 = arith.constant 0 : index
    %c0_99 = arith.constant 0 : index
    %121 = vector.load %arg5[%c0_98, %c0_99] : memref<4x40xf32, #tpu.memory_space<vmem>>, vector<4x40xf32>
    %c0_100 = arith.constant 0 : index
    %c0_101 = arith.constant 0 : index
    %122 = vector.load %arg10[%c0_100, %c0_101] : memref<40x256xf32, #tpu.memory_space<vmem>>, vector<40x256xf32>
    %cst_102 = arith.constant dense<0.000000e+00> : vector<4x256xf32>
    %123 = tpu.matmul %121, %122, %cst_102 {dimension_numbers = #tpu.dot_dimension_numbers<[1], [0], [0], [1], [0, 0, 1, 1], [], []>} : vector<4x40xf32>, vector<40x256xf32>, vector<4x256xf32> -> vector<4x256xf32>
    %cst_103 = arith.constant dense<0.000000e+00> : vector<4xf32>
    %124 = vector.multi_reduction <add>, %123, %cst_103 [1] : vector<4x256xf32> to vector<4xf32>
    %125 = vector.shape_cast %124 : vector<4xf32> to vector<4x1xf32>
    %126 = arith.mulf %123, %123 : vector<4x256xf32>
    %cst_104 = arith.constant dense<0.000000e+00> : vector<4xf32>
    %127 = vector.multi_reduction <add>, %126, %cst_104 [1] : vector<4x256xf32> to vector<4xf32>
    %128 = vector.shape_cast %127 : vector<4xf32> to vector<4x1xf32>
    %cst_105 = arith.constant 3.906250e-03 : f32
    %129 = vector.broadcast %cst_105 : f32 to vector<4x1xf32>
    %130 = arith.mulf %125, %129 : vector<4x1xf32>
    %cst_106 = arith.constant 3.906250e-03 : f32
    %131 = vector.broadcast %cst_106 : f32 to vector<4x1xf32>
    %132 = arith.mulf %128, %131 : vector<4x1xf32>
    %133 = arith.mulf %130, %130 : vector<4x1xf32>
    %134 = arith.subf %132, %133 : vector<4x1xf32>
    %cst_107 = arith.constant 0.000000e+00 : f32
    %135 = vector.broadcast %cst_107 : f32 to vector<4x1xf32>
    %136 = arith.maximumf %134, %135 : vector<4x1xf32>
    %137 = vector.broadcast %130 : vector<4x1xf32> to vector<4x256xf32>
    %138 = arith.subf %123, %137 : vector<4x256xf32>
    %cst_108 = arith.constant 9.99999974E-6 : f32
    %139 = vector.broadcast %cst_108 : f32 to vector<4x1xf32>
    %140 = arith.addf %136, %139 : vector<4x1xf32>
    %141 = math.rsqrt %140 : vector<4x1xf32>
    %142 = vector.broadcast %141 : vector<4x1xf32> to vector<4x256xf32>
    %143 = arith.mulf %138, %142 : vector<4x256xf32>
    %c0_109 = arith.constant 0 : index
    %c0_110 = arith.constant 0 : index
    %144 = vector.load %arg6[%c0_109, %c0_110] : memref<4x1xf32, #tpu.memory_space<vmem>>, vector<4x1xf32>
    %145 = vector.broadcast %144 : vector<4x1xf32> to vector<4x256xf32>
    %146 = arith.mulf %143, %145 : vector<4x256xf32>
    %c0_111 = arith.constant 0 : index
    %c0_112 = arith.constant 0 : index
    %147 = vector.load %arg7[%c0_111, %c0_112] : memref<4x1xf32, #tpu.memory_space<vmem>>, vector<4x1xf32>
    %148 = vector.broadcast %147 : vector<4x1xf32> to vector<4x256xf32>
    %149 = arith.addf %146, %148 : vector<4x256xf32>
    %150 = arith.addf %27, %149 : vector<4x256xf32>
    %c0_113 = arith.constant 0 : index
    %c0_114 = arith.constant 0 : index
    %c0_115 = arith.constant 0 : index
    %151 = vector.load %arg8[%c0_113, %c0_114, %c0_115] : memref<1x4x256xf32, #tpu.memory_space<vmem>>, vector<1x4x256xf32>
    %152 = vector.shape_cast %151 : vector<1x4x256xf32> to vector<4x256xf32>
    %153 = vector.shape_cast %150 : vector<4x256xf32> to vector<1x4x256xf32>
    tpu.vector_store %arg8[%c0_113, %c0_114, %c0_115], %153 {strides = array<i32>} : memref<1x4x256xf32, #tpu.memory_space<vmem>>, vector<1x4x256xf32>,
    return
  }
  func.func @transform_0(%arg0: i32) -> (i32, i32, i32) {
    %c0_i32 = arith.constant 0 : i32
    %c0_i32_0 = arith.constant 0 : i32
    %c0_i32_1 = arith.constant 0 : i32
    return %arg0, %c0_i32, %c0_i32_0 : i32, i32, i32
  }
  func.func @transform_1(%arg0: i32) -> (i32, i32) {
    %c0_i32 = arith.constant 0 : i32
    %c0_i32_0 = arith.constant 0 : i32
    %c0_i32_1 = arith.constant 0 : i32
    return %c0_i32, %c0_i32_0 : i32, i32
  }
  func.func @transform_2(%arg0: i32) -> (i32, i32) {
    %c0_i32 = arith.constant 0 : i32
    %c0_i32_0 = arith.constant 0 : i32
    %c0_i32_1 = arith.constant 0 : i32
    return %c0_i32, %c0_i32_0 : i32, i32
  }
  func.func @transform_3(%arg0: i32) -> (i32, i32) {
    %c0_i32 = arith.constant 0 : i32
    %c0_i32_0 = arith.constant 0 : i32
    %c0_i32_1 = arith.constant 0 : i32
    return %c0_i32, %c0_i32_0 : i32, i32
  }
  func.func @transform_4(%arg0: i32) -> (i32, i32) {
    %c0_i32 = arith.constant 0 : i32
    %c0_i32_0 = arith.constant 0 : i32
    %c0_i32_1 = arith.constant 0 : i32
    return %c0_i32, %c0_i32_0 : i32, i32
  }
  func.func @transform_5(%arg0: i32) -> (i32, i32) {
    %c0_i32 = arith.constant 0 : i32
    %c0_i32_0 = arith.constant 0 : i32
    %c0_i32_1 = arith.constant 0 : i32
    return %c0_i32, %c0_i32_0 : i32, i32
  }
  func.func @transform_6(%arg0: i32) -> (i32, i32) {
    %c0_i32 = arith.constant 0 : i32
    %c0_i32_0 = arith.constant 0 : i32
    %c0_i32_1 = arith.constant 0 : i32
    return %c0_i32, %c0_i32_0 : i32, i32
  }
  func.func @transform_7(%arg0: i32) -> (i32, i32, i32) {
    %c0_i32 = arith.constant 0 : i32
    %c0_i32_0 = arith.constant 0 : i32
    %c0_i32_1 = arith.constant 0 : i32
    return %arg0, %c0_i32, %c0_i32_0 : i32, i32, i32
  }
}

</mosaic_0001>

<llo_original>
// kernel: tpu_custom_call.1
$region0: #{tpu_custom_call.1}
  #allocation0 [shape = 'u32[]', space=smem, size = 0x4, offset = 0x4, fixed_abs, tag = 'smem constant byte address 0x4 - core index']
  #allocation1 [shape = 'u32[144,128]{1,0:T(1,128)}', space=vmem, size = 0x12000, scoped, tag = 'internal scratch']
  #allocation2 [shape = 'f32[4,512]{1,0:T(4,128)}', space=vmem, size = 0x2000, scoped, tag = 'scratch operand']
  #allocation3 [shape = 'f32[40,256]{1,0:T(8,128)}', space=vmem, size = 0xa000, scoped, tag = 'scratch operand']
  %s0 = inlined_call_operand.vmem [shape: f32[2,4,256], index: 0, kind: input, shape index: {}]
  %s1 = inlined_call_operand.vmem [shape: f32[4,40], index: 1, kind: input, shape index: {}]
  %s2 = inlined_call_operand.vmem [shape: f32[4,1], index: 2, kind: input, shape index: {}]
  %s3 = inlined_call_operand.vmem [shape: f32[4,1], index: 3, kind: input, shape index: {}]
  %s4 = inlined_call_operand.vmem [shape: f32[4,40], index: 4, kind: input, shape index: {}]
  %s5 = inlined_call_operand.vmem [shape: f32[4,1], index: 5, kind: input, shape index: {}]
  %s6 = inlined_call_operand.vmem [shape: f32[4,1], index: 6, kind: input, shape index: {}]
  %s7 = inlined_call_operand.hbm [shape: f32[2,4,256], index: 7, kind: output, shape index: {}]
  %s8 = sld [smem:[#allocation0]]
  $region61: #{tpu_custom_call.1} parent=0
    _
  %s10 = ssub.s32 1, %s8
  %s11 = scalar_select 0, %s10, %s8
  $region1: #{tpu_custom_call.1} parent=0
    #allocation4 [shape = 'u8[8192]{0}', space=vmem, size = 0x2000, scoped, tag = 'output window, operand 0']
    #allocation5 [shape = 's32[2]{0}', space=sflag, size = 0x8, scoped, tag = 'scoped memory for tpu_custom_call.1']
    %12 = vsyncpa [#allocation5], 0
    %s13 = scalar_lea.sflag [#allocation5], 1
    %14 = vsyncpa %s13, 0
    loop: start=0, step=1, limit=4
    $region2: #{tpu_custom_call.1} parent=1 // loop_pre_header
      _
    $region3: #{tpu_custom_call.1} parent=1 // loop_header
      %s16 = sphi 0, %s20
      %p17 = scmp.ge.s32.totalorder %s16, 4
      %s26 = sphi 0, %s28
      %s29 = sphi 0, %s26
      %s30 = sphi 0, %s29
      %s46 = sphi 0, %s30
      %s50 = sphi 0, %s50
      %s52 = sphi 0, %s50
      %s53 = sphi 0, %s52
      %s67 = sphi 0, %s53
      %s71 = sphi 0, %s71
      %s73 = sphi 0, %s71
      %s74 = sphi 0, %s73
      %s88 = sphi 0, %s74
      %s92 = sphi 0, %s92
      %s94 = sphi 0, %s92
      %s95 = sphi 0, %s94
      %s109 = sphi 0, %s95
      %s113 = sphi 0, %s113
      %s115 = sphi 0, %s113
      %s116 = sphi 0, %s115
      %s130 = sphi 0, %s116
      %s134 = sphi 0, %s134
      %s136 = sphi 0, %s134
      %s137 = sphi 0, %s136
      %s151 = sphi 0, %s137
      %s155 = sphi 0, %s155
      %s157 = sphi 0, %s155
      %s158 = sphi 0, %s157
      %s172 = sphi 0, %s158
      %s178 = sphi 0, %s180
      %s181 = sphi 0, %s178
      %s182 = sphi 0, %s181
      %s198 = sphi 0, %s182
    $region4: #{tpu_custom_call.1} parent=1 // loop_header_branch
      %19 = sbr.rel (%p17) target = $region8
    $region5: #{tpu_custom_call.1} parent=1 // loop_body
      %s21 = ssub.s32 %s16, 1
      %s22 = ssub.s32 %s16, 2
      %s23 = sadd.s32 %s16, 1
      %s24 = ssub.s32 %s16, %s23
      %p25 = scmp.eq.s32.totalorder %s24, 0
      %s27 = sadd.s32 %s26, 1
      %s28 = scalar_select %p25, %s26, %s27
      %p31 = pneg %p25
      %p32 = scmp.eq.s32.totalorder %s16, 1
      %p33 = por %p31, %p32
      %p34 = scmp.ne.s32.totalorder %s26, %s29
      %p35 = scmp.eq.s32.totalorder %s16, 0
      %p36 = por %p34, %p35
      %p37 = scmp.ne.s32.totalorder %s26, %s29
      %p38 = scmp.eq.s32.totalorder %s21, 1
      %p39 = por %p37, %p38
      %p40 = scmp.ne.s32.totalorder %s29, %s30
      %p41 = scmp.eq.s32.totalorder %s21, 0
      %p42 = por %p40, %p41
      %p43 = scmp.ne.s32.totalorder %s29, %s30
      %p44 = scmp.eq.s32.totalorder %s22, 1
      %p45 = por %p43, %p44
      %p47 = scmp.ne.s32.totalorder %s30, %s46
      %p48 = scmp.eq.s32.totalorder %s22, 0
      %p49 = por %p47, %p48
      %s51 = sadd.s32 %s50, 1
      %p54 = scmp.eq.s32.totalorder %s16, 1
      %p55 = scmp.ne.s32.totalorder %s50, %s52
      %p56 = scmp.eq.s32.totalorder %s16, 0
      %p57 = por %p55, %p56
      %p58 = scmp.ne.s32.totalorder %s50, %s52
      %p59 = scmp.eq.s32.totalorder %s21, 1
      %p60 = por %p58, %p59
      %p61 = scmp.ne.s32.totalorder %s52, %s53
      %p62 = scmp.eq.s32.totalorder %s21, 0
      %p63 = por %p61, %p62
      %p64 = scmp.ne.s32.totalorder %s52, %s53
      %p65 = scmp.eq.s32.totalorder %s22, 1
      %p66 = por %p64, %p65
      %p68 = scmp.ne.s32.totalorder %s53, %s67
      %p69 = scmp.eq.s32.totalorder %s22, 0
      %p70 = por %p68, %p69
      %s72 = sadd.s32 %s71, 1
      %p75 = scmp.eq.s32.totalorder %s16, 1
      %p76 = scmp.ne.s32.totalorder %s71, %s73
      %p77 = scmp.eq.s32.totalorder %s16, 0
      %p78 = por %p76, %p77
      %p79 = scmp.ne.s32.totalorder %s71, %s73
      %p80 = scmp.eq.s32.totalorder %s21, 1
      %p81 = por %p79, %p80
      %p82 = scmp.ne.s32.totalorder %s73, %s74
      %p83 = scmp.eq.s32.totalorder %s21, 0
      %p84 = por %p82, %p83
      %p85 = scmp.ne.s32.totalorder %s73, %s74
      %p86 = scmp.eq.s32.totalorder %s22, 1
      %p87 = por %p85, %p86
      %p89 = scmp.ne.s32.totalorder %s74, %s88
      %p90 = scmp.eq.s32.totalorder %s22, 0
      %p91 = por %p89, %p90
      %s93 = sadd.s32 %s92, 1
      %p96 = scmp.eq.s32.totalorder %s16, 1
      %p97 = scmp.ne.s32.totalorder %s92, %s94
      %p98 = scmp.eq.s32.totalorder %s16, 0
      %p99 = por %p97, %p98
      %p100 = scmp.ne.s32.totalorder %s92, %s94
      %p101 = scmp.eq.s32.totalorder %s21, 1
      %p102 = por %p100, %p101
      %p103 = scmp.ne.s32.totalorder %s94, %s95
      %p104 = scmp.eq.s32.totalorder %s21, 0
      %p105 = por %p103, %p104
      %p106 = scmp.ne.s32.totalorder %s94, %s95
      %p107 = scmp.eq.s32.totalorder %s22, 1
      %p108 = por %p106, %p107
      %p110 = scmp.ne.s32.totalorder %s95, %s109
      %p111 = scmp.eq.s32.totalorder %s22, 0
      %p112 = por %p110, %p111
      %s114 = sadd.s32 %s113, 1
      %p117 = scmp.eq.s32.totalorder %s16, 1
      %p118 = scmp.ne.s32.totalorder %s113, %s115
      %p119 = scmp.eq.s32.totalorder %s16, 0
      %p120 = por %p118, %p119
      %p121 = scmp.ne.s32.totalorder %s113, %s115
      %p122 = scmp.eq.s32.totalorder %s21, 1
      %p123 = por %p121, %p122
      %p124 = scmp.ne.s32.totalorder %s115, %s116
      %p125 = scmp.eq.s32.totalorder %s21, 0
      %p126 = por %p124, %p125
      %p127 = scmp.ne.s32.totalorder %s115, %s116
      %p128 = scmp.eq.s32.totalorder %s22, 1
      %p129 = por %p127, %p128
      %p131 = scmp.ne.s32.totalorder %s116, %s130
      %p132 = scmp.eq.s32.totalorder %s22, 0
      %p133 = por %p131, %p132
      %s135 = sadd.s32 %s134, 1
      %p138 = scmp.eq.s32.totalorder %s16, 1
      %p139 = scmp.ne.s32.totalorder %s134, %s136
      %p140 = scmp.eq.s32.totalorder %s16, 0
      %p141 = por %p139, %p140
      %p142 = scmp.ne.s32.totalorder %s134, %s136
      %p143 = scmp.eq.s32.totalorder %s21, 1
      %p144 = por %p142, %p143
      %p145 = scmp.ne.s32.totalorder %s136, %s137
      %p146 = scmp.eq.s32.totalorder %s21, 0
      %p147 = por %p145, %p146
      %p148 = scmp.ne.s32.totalorder %s136, %s137
      %p149 = scmp.eq.s32.totalorder %s22, 1
      %p150 = por %p148, %p149
      %p152 = scmp.ne.s32.totalorder %s137, %s151
      %p153 = scmp.eq.s32.totalorder %s22, 0
      %p154 = por %p152, %p153
      %s156 = sadd.s32 %s155, 1
      %p159 = scmp.eq.s32.totalorder %s16, 1
      %p160 = scmp.ne.s32.totalorder %s155, %s157
      %p161 = scmp.eq.s32.totalorder %s16, 0
      %p162 = por %p160, %p161
      %p163 = scmp.ne.s32.totalorder %s155, %s157
      %p164 = scmp.eq.s32.totalorder %s21, 1
      %p165 = por %p163, %p164
      %p166 = scmp.ne.s32.totalorder %s157, %s158
      %p167 = scmp.eq.s32.totalorder %s21, 0
      %p168 = por %p166, %p167
      %p169 = scmp.ne.s32.totalorder %s157, %s158
      %p170 = scmp.eq.s32.totalorder %s22, 1
      %p171 = por %p169, %p170
      %p173 = scmp.ne.s32.totalorder %s158, %s172
      %p174 = scmp.eq.s32.totalorder %s22, 0
      %p175 = por %p173, %p174
      %s176 = ssub.s32 %s16, %s23
      %p177 = scmp.eq.s32.totalorder %s176, 0
      %s179 = sadd.s32 %s178, 1
      %s180 = scalar_select %p177, %s178, %s179
      %p183 = pneg %p177
      %p184 = scmp.eq.s32.totalorder %s16, 1
      %p185 = por %p183, %p184
      %p186 = scmp.ne.s32.totalorder %s178, %s181
      %p187 = scmp.eq.s32.totalorder %s16, 0
      %p188 = por %p186, %p187
      %p189 = scmp.ne.s32.totalorder %s178, %s181
      %p190 = scmp.eq.s32.totalorder %s21, 1
      %p191 = por %p189, %p190
      %p192 = scmp.ne.s32.totalorder %s181, %s182
      %p193 = scmp.eq.s32.totalorder %s21, 0
      %p194 = por %p192, %p193
      %p195 = scmp.ne.s32.totalorder %s181, %s182
      %p196 = scmp.eq.s32.totalorder %s22, 1
      %p197 = por %p195, %p196
      %p199 = scmp.ne.s32.totalorder %s182, %s198
      %p200 = scmp.eq.s32.totalorder %s22, 0
      %p201 = por %p199, %p200
      %p202 = scmp.le.s32.totalorder 1, %s16
      %p203 = scmp.lt.s32.totalorder %s16, 3
      %p204 = pnand %p202, %p203
      %p205 = pneg %p204
      // Predicated region
      $region9: #{tpu_custom_call.1} parent=5 // pred_check
        _
      $region10: #{tpu_custom_call.1} parent=5 // pred_check_branch
        %207 = sbr.rel (%p204) target = $region12
      $region11: #{tpu_custom_call.1} parent=5 // pred_region
        %s208 = ssub.s32 %s16, 1
        // Predicated region
        $region13: #{tpu_custom_call.1} parent=11 // pred_check
          %p209 = pneg %p63
        $region14: #{tpu_custom_call.1} parent=11 // pred_check_branch
          %211 = sbr.rel (%p209) target = $region16
        $region15: #{tpu_custom_call.1} parent=11 // pred_region
          _
        $region16: #{tpu_custom_call.1} parent=11 // pred_fallthru
          _
        // Predicated region
        $region17: #{tpu_custom_call.1} parent=11 // pred_check
          %p212 = pneg %p84
        $region18: #{tpu_custom_call.1} parent=11 // pred_check_branch
          %214 = sbr.rel (%p212) target = $region20
        $region19: #{tpu_custom_call.1} parent=11 // pred_region
          _
        $region20: #{tpu_custom_call.1} parent=11 // pred_fallthru
          _
        // Predicated region
        $region21: #{tpu_custom_call.1} parent=11 // pred_check
          %p215 = pneg %p105
        $region22: #{tpu_custom_call.1} parent=11 // pred_check_branch
          %217 = sbr.rel (%p215) target = $region24
        $region23: #{tpu_custom_call.1} parent=11 // pred_region
          _
        $region24: #{tpu_custom_call.1} parent=11 // pred_fallthru
          _
        // Predicated region
        $region25: #{tpu_custom_call.1} parent=11 // pred_check
          %p218 = pneg %p126
        $region26: #{tpu_custom_call.1} parent=11 // pred_check_branch
          %220 = sbr.rel (%p218) target = $region28
        $region27: #{tpu_custom_call.1} parent=11 // pred_region
          _
        $region28: #{tpu_custom_call.1} parent=11 // pred_fallthru
          _
        // Predicated region
        $region29: #{tpu_custom_call.1} parent=11 // pred_check
          %p221 = pneg %p147
        $region30: #{tpu_custom_call.1} parent=11 // pred_check_branch
          %223 = sbr.rel (%p221) target = $region32
        $region31: #{tpu_custom_call.1} parent=11 // pred_region
          _
        $region32: #{tpu_custom_call.1} parent=11 // pred_fallthru
          _
        // Predicated region
        $region33: #{tpu_custom_call.1} parent=11 // pred_check
          %p224 = pneg %p168
        $region34: #{tpu_custom_call.1} parent=11 // pred_check_branch
          %226 = sbr.rel (%p224) target = $region36
        $region35: #{tpu_custom_call.1} parent=11 // pred_region
          _
        $region36: #{tpu_custom_call.1} parent=11 // pred_fallthru
          _
      $region12: #{tpu_custom_call.1} parent=5 // pred_fallthru
        _
      %p227 = scmp.lt.s32.totalorder %s16, 2
      // Predicated region
      $region37: #{tpu_custom_call.1} parent=5 // pred_check
        %p228 = pneg %p227
      $region38: #{tpu_custom_call.1} parent=5 // pred_check_branch
        %230 = sbr.rel (%p228) target = $region40
      $region39: #{tpu_custom_call.1} parent=5 // pred_region
        // Predicated region
        $region41: #{tpu_custom_call.1} parent=39 // pred_check
          %p231 = pneg %p36
        $region42: #{tpu_custom_call.1} parent=39 // pred_check_branch
          %233 = sbr.rel (%p231) target = $region44
        $region43: #{tpu_custom_call.1} parent=39 // pred_region
          %p234 = scmp.lt.s32.totalorder %s16, 1
          %s235 = scalar_select %p234, %s16, 1
          %s236 = smul.addr %s235, 2
          %s237 = smul.addr %s236, 4
          %s238 = scalar_lea.vmem %s0, %s237
        $region44: #{tpu_custom_call.1} parent=39 // pred_fallthru
          _
      $region40: #{tpu_custom_call.1} parent=5 // pred_fallthru
        _
      %p239 = scmp.le.s32.totalorder 1, %s16
      %p240 = scmp.lt.s32.totalorder %s16, 3
      %p241 = pnand %p239, %p240
      %p242 = pneg %p241
      // Predicated region
      $region45: #{tpu_custom_call.1} parent=5 // pred_check
        _
      $region46: #{tpu_custom_call.1} parent=5 // pred_check_branch
        %244 = sbr.rel (%p241) target = $region48
      $region47: #{tpu_custom_call.1} parent=5 // pred_region
        %s245 = ssub.s32 %s16, 1
        %p246 = scmp.lt.s32.totalorder %s21, 1
        %s247 = scalar_select %p246, %s21, 1
        %s248 = smul.addr %s247, 2
        %s249 = smul.addr %s248, 4
        %s250 = scalar_lea.vmem %s0, %s249
        %p251 = pneg %p42
        %p252 = pneg %p39
        %p253 = pneg %p63
        %p254 = pneg %p60
        %p255 = pneg %p84
        %p256 = pneg %p81
        %p257 = pneg %p105
        %p258 = pneg %p102
        %p259 = pneg %p126
        %p260 = pneg %p123
        %p261 = pneg %p147
        %p262 = pneg %p144
        %p263 = pneg %p168
        %p264 = pneg %p165
        %p265 = pneg %p194
        %p266 = pneg %p191
        %s267 = sand.u32 %s181, 1
        %s268 = scalar_lea.sflag [#allocation5], %s267
        %s269 = sand.u32 %s181, 1
        %s270 = smul.addr %s269, 8
        %s271 = scalar_lea.vmem [#allocation4], %s270
        %p272 = scmp.lt.s32.totalorder %s21, 1
        %s273 = scalar_select %p272, %s21, 1
        %s274 = smul.addr %s273, 2
        %s275 = smul.addr %s274, 4
        %s276 = scalar_lea.vmem %s0, %s275
        %v277 = vlaneseq
        %v278 = vand.u32 %v277, 127
        %v279 = vadd.s32 %v278, 128
        %vm280 = vcmp.lt.s32.totalorder %v278, 0
        %v281 = vsub.s32 0, %v278
        %v282 = vsel %vm280, %v281, %v278
        %v283 = vshrl.u32 %v282, 4
        %v284 = vand.u32 %v282, 15
        %v285 = vsub.s32 0, %v284
        %v286 = vsel %vm280, %v285, %v284
        %vm287 = vcmp.lt.s32.totalorder %v279, 0
        %v288 = vsub.s32 0, %v279
        %v289 = vsel %vm287, %v288, %v279
        %v290 = vshrl.u32 %v289, 4
        %v291 = vand.u32 %v289, 15
        %v292 = vsub.s32 0, %v291
        %v293 = vsel %vm287, %v292, %v291
        %vm294 = vcmp.ne.s32.totalorder %v286, 0
        %vm295 = vcmp.ne.s32.totalorder %v293, 0
        %vm296 = vcmp.lt.s32.totalorder %v286, 0
        %vm297 = vcmp.lt.s32.totalorder %v293, 0
        %vm298 = vmand %vm296, %vm294
        %vm299 = vmand %vm297, %vm295
        %v300 = vadd.s32 %v286, 16
        %v301 = vadd.s32 %v293, 16
        %v302 = vsel %vm298, %v300, %v286
        %v303 = vsel %vm299, %v301, %v293
        %vm304 = vcmp.ge.s32.totalorder %v302, 1
        %vm305 = vcmp.ge.s32.totalorder %v303, 1
        %vm306 = vcmp.le.s32.totalorder %v302, 14
        %vm307 = vcmp.le.s32.totalorder %v303, 14
        %308 = vst [vmem:[#allocation2] sm:$0xf] 0.0
        %309 = vst [vmem:[#allocation2 + $0xc] sm:$0xf] 0.0
        %310 = vst [vmem:[#allocation3 + $0x40] sm:$0xf0] 0.0
        %311 = vst [vmem:[#allocation3 + $0x48] sm:$0xf0] 0.0
        %v312 = vld [vmem:[%s276] sm:$0xff]
        %313 = vst [vmem:[#allocation2 + $0x4] sm:$0xff] %v312
        %v314 = vld [vmem:[#allocation2] sm:$0xff]
        %v315 = vld [vmem:[#allocation2 + $0x8] sm:$0xf]
        %v318 = vcombine.high %v314, %v314
        %319 = vrot.lane.b32.xlu0 %v314, 17
        %v320 = vpop.permute.xlu0 %319
        %321 = vrot.lane.b32.xlu0 %v318, 17
        %v322 = vpop.permute.xlu0 %321
        %323 = vrot.lane.b32.xlu0 %v315, 17
        %v324 = vpop.permute.xlu0 %323
        %vm325 = vcmask 138240
        %v326 = vsel %vm325, %v320, %v322
        %v327 = vsel %vm325, %v322, %v324
        %v330 = vsel %vm304, %v326, 0.0
        %v331 = vsel %vm305, %v327, 0.0
        %332 = vst [vmem:[#allocation3] sm:$0xf] %v330
        %333 = vst [vmem:[#allocation3 + $0x8] sm:$0xf] %v331
        %v334 = vld [vmem:[#allocation2] sm:$0xff]
        %v335 = vld [vmem:[#allocation2 + $0x8] sm:$0xf]
        %v338 = vcombine.low %v334, %v334
        %v339 = vcombine.low %v335, %v335
        %340 = vrot.lane.b32.xlu0 %v338, 16
        %v341 = vpop.permute.xlu0 %340
        %342 = vrot.lane.b32.xlu0 %v334, 16
        %v343 = vpop.permute.xlu0 %342
        %344 = vrot.lane.b32.xlu0 %v339, 16
        %v345 = vpop.permute.xlu0 %344
        %vm346 = vcmask 130048
        %v347 = vsel %vm346, %v341, %v343
        %v348 = vsel %vm346, %v343, %v345
        %351 = vst [vmem:[#allocation3] sm:$0xf0] %v347
        %352 = vst [vmem:[#allocation3 + $0x8] sm:$0xf0] %v348
        %v353 = vld [vmem:[#allocation2] sm:$0xff]
        %v354 = vld [vmem:[#allocation2 + $0x8] sm:$0xf]
        %v357 = vcombine.high %v353, %v353
        %358 = vrot.lane.b32.xlu0 %v353, 15
        %v359 = vpop.permute.xlu0 %358
        %360 = vrot.lane.b32.xlu0 %v357, 15
        %v361 = vpop.permute.xlu0 %360
        %362 = vrot.lane.b32.xlu0 %v354, 15
        %v363 = vpop.permute.xlu0 %362
        %vm364 = vcmask 121856
        %v365 = vsel %vm364, %v359, %v361
        %v366 = vsel %vm364, %v361, %v363
        %v369 = vsel %vm306, %v365, 0.0
        %v370 = vsel %vm307, %v366, 0.0
        %371 = vst [vmem:[#allocation3 + $0x10] sm:$0xf] %v369
        %372 = vst [vmem:[#allocation3 + $0x18] sm:$0xf] %v370
        %v373 = vld [vmem:[#allocation2] sm:$0xff]
        %v374 = vld [vmem:[#allocation2 + $0x8] sm:$0xf]
        %v377 = vcombine.high %v373, %v373
        %378 = vrot.lane.b32.xlu0 %v373, 1
        %v379 = vpop.permute.xlu0 %378
        %380 = vrot.lane.b32.xlu0 %v377, 1
        %v381 = vpop.permute.xlu0 %380
        %382 = vrot.lane.b32.xlu0 %v374, 1
        %v383 = vpop.permute.xlu0 %382
        %vm384 = vcmask 7168
        %v385 = vsel %vm384, %v379, %v381
        %v386 = vsel %vm384, %v381, %v383
        %v389 = vsel %vm304, %v385, 0.0
        %v390 = vsel %vm305, %v386, 0.0
        %v393 = vrot.slane %v389, 4
        %v394 = vrot.slane %v390, 4
        %397 = vst [vmem:[#allocation3 + $0x10] sm:$0xf0] %v393
        %398 = vst [vmem:[#allocation3 + $0x18] sm:$0xf0] %v394
        %v399 = vld [vmem:[#allocation2 + $0x4] sm:$0xff]
        %v401 = vcombine.high %v399, %v399
        %403 = vst [vmem:[#allocation3 + $0x20] sm:$0xf] %v399
        %404 = vst [vmem:[#allocation3 + $0x28] sm:$0xf] %v401
        %v405 = vld [vmem:[#allocation2 + $0x4] sm:$0xff]
        %v406 = vld [vmem:[#allocation2 + $0xc] sm:$0xf]
        %v409 = vcombine.high %v405, %v405
        %410 = vrot.lane.b32.xlu0 %v405, 127
        %v411 = vpop.permute.xlu0 %410
        %412 = vrot.lane.b32.xlu0 %v409, 127
        %v413 = vpop.permute.xlu0 %412
        %414 = vrot.lane.b32.xlu0 %v406, 127
        %v415 = vpop.permute.xlu0 %414
        %vm416 = vcmask 1039360
        %v417 = vsel %vm416, %v411, %v413
        %v418 = vsel %vm416, %v413, %v415
        %v421 = vsel %vm306, %v417, 0.0
        %v422 = vsel %vm307, %v418, 0.0
        %v425 = vrot.slane %v421, 4
        %v426 = vrot.slane %v422, 4
        %429 = vst [vmem:[#allocation3 + $0x20] sm:$0xf0] %v425
        %430 = vst [vmem:[#allocation3 + $0x28] sm:$0xf0] %v426
        %v431 = vld [vmem:[#allocation2 + $0x4] sm:$0xff]
        %v432 = vld [vmem:[#allocation2 + $0xc] sm:$0xf]
        %v435 = vcombine.high %v431, %v431
        %436 = vrot.lane.b32.xlu0 %v431, 113
        %v437 = vpop.permute.xlu0 %436
        %438 = vrot.lane.b32.xlu0 %v435, 113
        %v439 = vpop.permute.xlu0 %438
        %440 = vrot.lane.b32.xlu0 %v432, 113
        %v441 = vpop.permute.xlu0 %440
        %vm442 = vcmask 924672
        %v443 = vsel %vm442, %v437, %v439
        %v444 = vsel %vm442, %v439, %v441
        %v447 = vsel %vm304, %v443, 0.0
        %v448 = vsel %vm305, %v444, 0.0
        %449 = vst [vmem:[#allocation3 + $0x30] sm:$0xf] %v447
        %450 = vst [vmem:[#allocation3 + $0x38] sm:$0xf] %v448
        %v451 = vld [vmem:[#allocation2 + $0x4] sm:$0xff]
        %v452 = vld [vmem:[#allocation2 + $0xc] sm:$0xf]
        %v455 = vcombine.low %v451, %v451
        %v456 = vcombine.low %v452, %v452
        %457 = vrot.lane.b32.xlu0 %v455, 112
        %v458 = vpop.permute.xlu0 %457
        %459 = vrot.lane.b32.xlu0 %v451, 112
        %v460 = vpop.permute.xlu0 %459
        %461 = vrot.lane.b32.xlu0 %v456, 112
        %v462 = vpop.permute.xlu0 %461
        %vm463 = vcmask 916480
        %v464 = vsel %vm463, %v458, %v460
        %v465 = vsel %vm463, %v460, %v462
        %468 = vst [vmem:[#allocation3 + $0x30] sm:$0xf0] %v464
        %469 = vst [vmem:[#allocation3 + $0x38] sm:$0xf0] %v465
        %v470 = vld [vmem:[#allocation2 + $0x4] sm:$0xff]
        %v471 = vld [vmem:[#allocation2 + $0xc] sm:$0xf]
        %v474 = vcombine.high %v470, %v470
        %475 = vrot.lane.b32.xlu0 %v470, 111
        %v476 = vpop.permute.xlu0 %475
        %477 = vrot.lane.b32.xlu0 %v474, 111
        %v478 = vpop.permute.xlu0 %477
        %479 = vrot.lane.b32.xlu0 %v471, 111
        %v480 = vpop.permute.xlu0 %479
        %vm481 = vcmask 908288
        %v482 = vsel %vm481, %v476, %v478
        %v483 = vsel %vm481, %v478, %v480
        %v486 = vsel %vm306, %v482, 0.0
        %v487 = vsel %vm307, %v483, 0.0
        %488 = vst [vmem:[#allocation3 + $0x40] sm:$0xf] %v486
        %489 = vst [vmem:[#allocation3 + $0x48] sm:$0xf] %v487
        %v490 = vld [vmem:[%s1] sm:$0xf]
        %v491 = vld [vmem:[#allocation3] sm:$0xff]
        %v492 = vld [vmem:[#allocation3 + $0x8] sm:$0xff]
        %v493 = vld [vmem:[#allocation3 + $0x10] sm:$0xff]
        %v494 = vld [vmem:[#allocation3 + $0x18] sm:$0xff]
        %v495 = vld [vmem:[#allocation3 + $0x20] sm:$0xff]
        %v496 = vld [vmem:[#allocation3 + $0x28] sm:$0xff]
        %v497 = vld [vmem:[#allocation3 + $0x30] sm:$0xff]
        %v498 = vld [vmem:[#allocation3 + $0x38] sm:$0xff]
        %v499 = vld [vmem:[#allocation3 + $0x40] sm:$0xff]
        %v500 = vld [vmem:[#allocation3 + $0x48] sm:$0xff]
        %vm501 = vcmask 326656
        %v503 = vsel %vm501, %v490, 0
        %505 = vmatprep.subr.mxu0 %v492
        %506 = vmatpush1.msra.mxu0 %v491
        %507 = vmatprep.subr.mxu0 %v494
        %508 = vmatpush1.msra.mxu0 %v493
        %509 = vmatprep.subr.mxu0 %v496
        %510 = vmatpush1.msra.mxu0 %v495
        %511 = vmatprep.subr.mxu0 %v498
        %512 = vmatpush1.msra.mxu0 %v497
        %513 = vmatprep.subr.mxu0 %v500
        %514 = vmatpush1.msra.mxu0 %v499
        %515 = vmatprep.subr.mxu0 0.0
        %516 = vmatpush1.msra.mxu0 0.0
        %517 = vmatprep.subr.mxu0 0.0
        %518 = vmatpush1.msra.mxu0 0.0
        %519 = vmatprep.subr.mxu0 0.0
        %520 = vmatpush1.msra.mxu0 0.0
        %521 = vmatprep.subr.mxu0 0.0
        %522 = vmatpush1.msra.mxu0 0.0
        %523 = vmatprep.subr.mxu0 0.0
        %524 = vmatpush1.msra.mxu0 0.0
        %525 = vmatprep.subr.mxu0 0.0
        %526 = vmatpush1.msra.mxu0 0.0
        %527 = vmatprep.subr.mxu0 0.0
        %528 = vmatpush1.msra.mxu0 0.0
        %529 = vmatprep.subr.mxu0 0.0
        %530 = vmatpush1.msra.mxu0 0.0
        %531 = vmatprep.subr.mxu0 0.0
        %532 = vmatpush1.msra.mxu0 0.0
        %533 = vmatprep.subr.mxu0 0.0
        %534 = vmatpush1.msra.mxu0 0.0
        %535 = vmatprep.subr.mxu0 0.0
        %536 = vmatpush1.msra.mxu0 0.0
        %537 = vmatprep.subr.mxu0 0.0
        %538 = vmatpush1.msra.mxu0 0.0
        %539 = vmatprep.subr.mxu0 0.0
        %540 = vmatpush1.msra.mxu0 0.0
        %541 = vmatprep.subr.mxu0 0.0
        %542 = vmatpush1.msra.mxu0 0.0
        %543 = vmatprep.subr.mxu0 0.0
        %544 = vmatpush1.msra.mxu0 0.0
        %545 = vmatprep.subr.mxu0 0.0
        %546 = vmatpush1.msra.mxu0 0.0
        %547 = vmatprep.subr.mxu0 0.0
        %548 = vmatpush1.msra.mxu0 0.0
        %549 = vmatprep.subr.mxu0 0.0
        %550 = vmatpush1.msra.mxu0 0.0
        %551 = vmatprep.subr.mxu0 0.0
        %552 = vmatpush1.msra.mxu0 0.0
        %553 = vmatprep.subr.mxu0 0.0
        %554 = vmatpush1.msra.mxu0 0.0
        %555 = vmatprep.subr.mxu0 0.0
        %556 = vmatpush1.msra.mxu0 0.0
        %557 = vmatprep.subr.mxu0 0.0
        %558 = vmatpush1.msra.mxu0 0.0
        %559 = vmatprep.subr.mxu0 0.0
        %560 = vmatpush1.msra.mxu0 0.0
        %561 = vmatprep.subr.mxu0 0.0
        %562 = vmatpush1.msra.mxu0 0.0
        %563 = vmatprep.subr.mxu0 0.0
        %564 = vmatpush1.msra.mxu0 0.0
        %565 = vmatprep.subr.mxu0 0.0
        %566 = vmatpush1.msra.mxu0 0.0
        %567 = vmatprep.subr.mxu0 0.0
        %568 = vmatpush1.msra.mxu0 0.0
        %569 = vmatprep.mubr.f32.mxu0 0.0
        %570 = vmatmul.mubr.f32.gmra.mrb[0].mxu0 %v503
        %v571 = vpop.f32.mrb[0].mxu0
        %v572 = vadd.f32 0.0, %v571
        %v573 = vpop.f32.mrb[0].mxu0
        %v574 = vadd.f32 0.0, %v573
        %575 = vdwg.mxu0
        %vm576 = vcmask 1043456
        %v577 = vsel %vm576, %v572, 0.0
        %v578 = vsel %vm576, %v574, 0.0
        %v579 = vadd.f32 %v577, %v578
        %580 = vadd.xlane.f32.xlu0 %v579
        %v581 = vpop.xlane.xlu0 %580
        %v582 = vmul.f32 %v572, %v572
        %v583 = vmul.f32 %v574, %v574
        %v584 = vsel %vm576, %v582, 0.0
        %v585 = vsel %vm576, %v583, 0.0
        %v586 = vadd.f32 %v584, %v585
        %587 = vadd.xlane.f32.xlu0 %v586
        %v588 = vpop.xlane.xlu0 %587
        %v589 = vmul.f32 %v581, 0.00390625
        %v590 = vmul.f32 %v588, 0.00390625
        %v591 = vmul.f32 %v589, %v589
        %v592 = vsub.f32 %v590, %v591
        %v593 = vmax.f32 %v592, 0.0
        %v594 = vsub.f32 %v572, %v589
        %v595 = vsub.f32 %v574, %v589
        %v596 = vadd.f32 %v593, 1e-05
        %v597 = vrsqrt.pop %v596
        %v598 = vmul.f32 %v594, %v597
        %v599 = vmul.f32 %v595, %v597
        %v600 = vld [vmem:[%s2] sm:$0xf]
        %602 = vset.pattern.permute.xlu0 0
        %603 = vperm.xlu0 %602, %v600
        %v604 = vpop.permute.xlu0 %603
        %v606 = vmul.f32 %v598, %v604
        %v607 = vmul.f32 %v599, %v604
        %v608 = vld [vmem:[%s3] sm:$0xf]
        %610 = vset.pattern.permute.xlu0 0
        %611 = vperm.xlu0 %610, %v608
        %v612 = vpop.permute.xlu0 %611
        %v614 = vadd.f32 %v606, %v612
        %v615 = vadd.f32 %v607, %v612
        %v616 = vmax.f32 %v614, 0.0
        %v617 = vmax.f32 %v615, 0.0
        %v620 = vcombine.low %v616, %v617
        %622 = vst [vmem:[#allocation2 + $0x4] sm:$0xff] %v620
        %v623 = vld [vmem:[#allocation2] sm:$0xff]
        %v624 = vld [vmem:[#allocation2 + $0x8] sm:$0xf]
        %v627 = vcombine.high %v623, %v623
        %628 = vrot.lane.b32.xlu0 %v623, 17
        %v629 = vpop.permute.xlu0 %628
        %630 = vrot.lane.b32.xlu0 %v627, 17
        %v631 = vpop.permute.xlu0 %630
        %632 = vrot.lane.b32.xlu0 %v624, 17
        %v633 = vpop.permute.xlu0 %632
        %v634 = vsel %vm325, %v629, %v631
        %v635 = vsel %vm325, %v631, %v633
        %v638 = vsel %vm304, %v634, 0.0
        %v639 = vsel %vm305, %v635, 0.0
        %640 = vst [vmem:[#allocation3] sm:$0xf] %v638
        %641 = vst [vmem:[#allocation3 + $0x8] sm:$0xf] %v639
        %v642 = vld [vmem:[#allocation2] sm:$0xff]
        %v643 = vld [vmem:[#allocation2 + $0x8] sm:$0xf]
        %v646 = vcombine.low %v642, %v642
        %v647 = vcombine.low %v643, %v643
        %648 = vrot.lane.b32.xlu0 %v646, 16
        %v649 = vpop.permute.xlu0 %648
        %650 = vrot.lane.b32.xlu0 %v642, 16
        %v651 = vpop.permute.xlu0 %650
        %652 = vrot.lane.b32.xlu0 %v647, 16
        %v653 = vpop.permute.xlu0 %652
        %v654 = vsel %vm346, %v649, %v651
        %v655 = vsel %vm346, %v651, %v653
        %658 = vst [vmem:[#allocation3] sm:$0xf0] %v654
        %659 = vst [vmem:[#allocation3 + $0x8] sm:$0xf0] %v655
        %v660 = vld [vmem:[#allocation2] sm:$0xff]
        %v661 = vld [vmem:[#allocation2 + $0x8] sm:$0xf]
        %v664 = vcombine.high %v660, %v660
        %665 = vrot.lane.b32.xlu0 %v660, 15
        %v666 = vpop.permute.xlu0 %665
        %667 = vrot.lane.b32.xlu0 %v664, 15
        %v668 = vpop.permute.xlu0 %667
        %669 = vrot.lane.b32.xlu0 %v661, 15
        %v670 = vpop.permute.xlu0 %669
        %v671 = vsel %vm364, %v666, %v668
        %v672 = vsel %vm364, %v668, %v670
        %v675 = vsel %vm306, %v671, 0.0
        %v676 = vsel %vm307, %v672, 0.0
        %677 = vst [vmem:[#allocation3 + $0x10] sm:$0xf] %v675
        %678 = vst [vmem:[#allocation3 + $0x18] sm:$0xf] %v676
        %v679 = vld [vmem:[#allocation2] sm:$0xff]
        %v680 = vld [vmem:[#allocation2 + $0x8] sm:$0xf]
        %v683 = vcombine.high %v679, %v679
        %684 = vrot.lane.b32.xlu0 %v679, 1
        %v685 = vpop.permute.xlu0 %684
        %686 = vrot.lane.b32.xlu0 %v683, 1
        %v687 = vpop.permute.xlu0 %686
        %688 = vrot.lane.b32.xlu0 %v680, 1
        %v689 = vpop.permute.xlu0 %688
        %v690 = vsel %vm384, %v685, %v687
        %v691 = vsel %vm384, %v687, %v689
        %v694 = vsel %vm304, %v690, 0.0
        %v695 = vsel %vm305, %v691, 0.0
        %v698 = vrot.slane %v694, 4
        %v699 = vrot.slane %v695, 4
        %702 = vst [vmem:[#allocation3 + $0x10] sm:$0xf0] %v698
        %703 = vst [vmem:[#allocation3 + $0x18] sm:$0xf0] %v699
        %v704 = vld [vmem:[#allocation2 + $0x4] sm:$0xff]
        %v706 = vcombine.high %v704, %v704
        %708 = vst [vmem:[#allocation3 + $0x20] sm:$0xf] %v704
        %709 = vst [vmem:[#allocation3 + $0x28] sm:$0xf] %v706
        %v710 = vld [vmem:[#allocation2 + $0x4] sm:$0xff]
        %v711 = vld [vmem:[#allocation2 + $0xc] sm:$0xf]
        %v714 = vcombine.high %v710, %v710
        %715 = vrot.lane.b32.xlu0 %v710, 127
        %v716 = vpop.permute.xlu0 %715
        %717 = vrot.lane.b32.xlu0 %v714, 127
        %v718 = vpop.permute.xlu0 %717
        %719 = vrot.lane.b32.xlu0 %v711, 127
        %v720 = vpop.permute.xlu0 %719
        %v721 = vsel %vm416, %v716, %v718
        %v722 = vsel %vm416, %v718, %v720
        %v725 = vsel %vm306, %v721, 0.0
        %v726 = vsel %vm307, %v722, 0.0
        %v729 = vrot.slane %v725, 4
        %v730 = vrot.slane %v726, 4
        %733 = vst [vmem:[#allocation3 + $0x20] sm:$0xf0] %v729
        %734 = vst [vmem:[#allocation3 + $0x28] sm:$0xf0] %v730
        %v735 = vld [vmem:[#allocation2 + $0x4] sm:$0xff]
        %v736 = vld [vmem:[#allocation2 + $0xc] sm:$0xf]
        %v739 = vcombine.high %v735, %v735
        %740 = vrot.lane.b32.xlu0 %v735, 113
        %v741 = vpop.permute.xlu0 %740
        %742 = vrot.lane.b32.xlu0 %v739, 113
        %v743 = vpop.permute.xlu0 %742
        %744 = vrot.lane.b32.xlu0 %v736, 113
        %v745 = vpop.permute.xlu0 %744
        %v746 = vsel %vm442, %v741, %v743
        %v747 = vsel %vm442, %v743, %v745
        %v750 = vsel %vm304, %v746, 0.0
        %v751 = vsel %vm305, %v747, 0.0
        %752 = vst [vmem:[#allocation3 + $0x30] sm:$0xf] %v750
        %753 = vst [vmem:[#allocation3 + $0x38] sm:$0xf] %v751
        %v754 = vld [vmem:[#allocation2 + $0x4] sm:$0xff]
        %v755 = vld [vmem:[#allocation2 + $0xc] sm:$0xf]
        %v758 = vcombine.low %v754, %v754
        %v759 = vcombine.low %v755, %v755
        %760 = vrot.lane.b32.xlu0 %v758, 112
        %v761 = vpop.permute.xlu0 %760
        %762 = vrot.lane.b32.xlu0 %v754, 112
        %v763 = vpop.permute.xlu0 %762
        %764 = vrot.lane.b32.xlu0 %v759, 112
        %v765 = vpop.permute.xlu0 %764
        %v766 = vsel %vm463, %v761, %v763
        %v767 = vsel %vm463, %v763, %v765
        %770 = vst [vmem:[#allocation3 + $0x30] sm:$0xf0] %v766
        %771 = vst [vmem:[#allocation3 + $0x38] sm:$0xf0] %v767
        %v772 = vld [vmem:[#allocation2 + $0x4] sm:$0xff]
        %v773 = vld [vmem:[#allocation2 + $0xc] sm:$0xf]
        %v776 = vcombine.high %v772, %v772
        %777 = vrot.lane.b32.xlu0 %v772, 111
        %v778 = vpop.permute.xlu0 %777
        %779 = vrot.lane.b32.xlu0 %v776, 111
        %v780 = vpop.permute.xlu0 %779
        %781 = vrot.lane.b32.xlu0 %v773, 111
        %v782 = vpop.permute.xlu0 %781
        %v783 = vsel %vm481, %v778, %v780
        %v784 = vsel %vm481, %v780, %v782
        %v787 = vsel %vm306, %v783, 0.0
        %v788 = vsel %vm307, %v784, 0.0
        %789 = vst [vmem:[#allocation3 + $0x40] sm:$0xf] %v787
        %790 = vst [vmem:[#allocation3 + $0x48] sm:$0xf] %v788
        %v791 = vld [vmem:[%s4] sm:$0xf]
        %v792 = vld [vmem:[#allocation3] sm:$0xff]
        %v793 = vld [vmem:[#allocation3 + $0x8] sm:$0xff]
        %v794 = vld [vmem:[#allocation3 + $0x10] sm:$0xff]
        %v795 = vld [vmem:[#allocation3 + $0x18] sm:$0xff]
        %v796 = vld [vmem:[#allocation3 + $0x20] sm:$0xff]
        %v797 = vld [vmem:[#allocation3 + $0x28] sm:$0xff]
        %v798 = vld [vmem:[#allocation3 + $0x30] sm:$0xff]
        %v799 = vld [vmem:[#allocation3 + $0x38] sm:$0xff]
        %v800 = vld [vmem:[#allocation3 + $0x40] sm:$0xff]
        %v801 = vld [vmem:[#allocation3 + $0x48] sm:$0xff]
        %v803 = vsel %vm501, %v791, 0
        %805 = vmatprep.subr.mxu0 %v793
        %806 = vmatpush1.msra.mxu0 %v792
        %807 = vmatprep.subr.mxu0 %v795
        %808 = vmatpush1.msra.mxu0 %v794
        %809 = vmatprep.subr.mxu0 %v797
        %810 = vmatpush1.msra.mxu0 %v796
        %811 = vmatprep.subr.mxu0 %v799
        %812 = vmatpush1.msra.mxu0 %v798
        %813 = vmatprep.subr.mxu0 %v801
        %814 = vmatpush1.msra.mxu0 %v800
        %815 = vmatprep.subr.mxu0 0.0
        %816 = vmatpush1.msra.mxu0 0.0
        %817 = vmatprep.subr.mxu0 0.0
        %818 = vmatpush1.msra.mxu0 0.0
        %819 = vmatprep.subr.mxu0 0.0
        %820 = vmatpush1.msra.mxu0 0.0
        %821 = vmatprep.subr.mxu0 0.0
        %822 = vmatpush1.msra.mxu0 0.0
        %823 = vmatprep.subr.mxu0 0.0
        %824 = vmatpush1.msra.mxu0 0.0
        %825 = vmatprep.subr.mxu0 0.0
        %826 = vmatpush1.msra.mxu0 0.0
        %827 = vmatprep.subr.mxu0 0.0
        %828 = vmatpush1.msra.mxu0 0.0
        %829 = vmatprep.subr.mxu0 0.0
        %830 = vmatpush1.msra.mxu0 0.0
        %831 = vmatprep.subr.mxu0 0.0
        %832 = vmatpush1.msra.mxu0 0.0
        %833 = vmatprep.subr.mxu0 0.0
        %834 = vmatpush1.msra.mxu0 0.0
        %835 = vmatprep.subr.mxu0 0.0
        %836 = vmatpush1.msra.mxu0 0.0
        %837 = vmatprep.subr.mxu0 0.0
        %838 = vmatpush1.msra.mxu0 0.0
        %839 = vmatprep.subr.mxu0 0.0
        %840 = vmatpush1.msra.mxu0 0.0
        %841 = vmatprep.subr.mxu0 0.0
        %842 = vmatpush1.msra.mxu0 0.0
        %843 = vmatprep.subr.mxu0 0.0
        %844 = vmatpush1.msra.mxu0 0.0
        %845 = vmatprep.subr.mxu0 0.0
        %846 = vmatpush1.msra.mxu0 0.0
        %847 = vmatprep.subr.mxu0 0.0
        %848 = vmatpush1.msra.mxu0 0.0
        %849 = vmatprep.subr.mxu0 0.0
        %850 = vmatpush1.msra.mxu0 0.0
        %851 = vmatprep.subr.mxu0 0.0
        %852 = vmatpush1.msra.mxu0 0.0
        %853 = vmatprep.subr.mxu0 0.0
        %854 = vmatpush1.msra.mxu0 0.0
        %855 = vmatprep.subr.mxu0 0.0
        %856 = vmatpush1.msra.mxu0 0.0
        %857 = vmatprep.subr.mxu0 0.0
        %858 = vmatpush1.msra.mxu0 0.0
        %859 = vmatprep.subr.mxu0 0.0
        %860 = vmatpush1.msra.mxu0 0.0
        %861 = vmatprep.subr.mxu0 0.0
        %862 = vmatpush1.msra.mxu0 0.0
        %863 = vmatprep.subr.mxu0 0.0
        %864 = vmatpush1.msra.mxu0 0.0
        %865 = vmatprep.subr.mxu0 0.0
        %866 = vmatpush1.msra.mxu0 0.0
        %867 = vmatprep.subr.mxu0 0.0
        %868 = vmatpush1.msra.mxu0 0.0
        %869 = vmatprep.mubr.f32.mxu0 0.0
        %870 = vmatmul.mubr.f32.gmra.mrb[0].mxu0 %v803
        %v871 = vpop.f32.mrb[0].mxu0
        %v872 = vadd.f32 0.0, %v871
        %v873 = vpop.f32.mrb[0].mxu0
        %v874 = vadd.f32 0.0, %v873
        %875 = vdwg.mxu0
        %v876 = vsel %vm576, %v872, 0.0
        %v877 = vsel %vm576, %v874, 0.0
        %v878 = vadd.f32 %v876, %v877
        %879 = vadd.xlane.f32.xlu0 %v878
        %v880 = vpop.xlane.xlu0 %879
        %v881 = vmul.f32 %v872, %v872
        %v882 = vmul.f32 %v874, %v874
        %v883 = vsel %vm576, %v881, 0.0
        %v884 = vsel %vm576, %v882, 0.0
        %v885 = vadd.f32 %v883, %v884
        %886 = vadd.xlane.f32.xlu0 %v885
        %v887 = vpop.xlane.xlu0 %886
        %v888 = vmul.f32 %v880, 0.00390625
        %v889 = vmul.f32 %v887, 0.00390625
        %v890 = vmul.f32 %v888, %v888
        %v891 = vsub.f32 %v889, %v890
        %v892 = vmax.f32 %v891, 0.0
        %v893 = vsub.f32 %v872, %v888
        %v894 = vsub.f32 %v874, %v888
        %v895 = vadd.f32 %v892, 1e-05
        %v896 = vrsqrt.pop %v895
        %v897 = vmul.f32 %v893, %v896
        %v898 = vmul.f32 %v894, %v896
        %v899 = vld [vmem:[%s5] sm:$0xf]
        %901 = vset.pattern.permute.xlu0 0
        %902 = vperm.xlu0 %901, %v899
        %v903 = vpop.permute.xlu0 %902
        %v905 = vmul.f32 %v897, %v903
        %v906 = vmul.f32 %v898, %v903
        %v907 = vld [vmem:[%s6] sm:$0xf]
        %909 = vset.pattern.permute.xlu0 0
        %910 = vperm.xlu0 %909, %v907
        %v911 = vpop.permute.xlu0 %910
        %v913 = vadd.f32 %v905, %v911
        %v914 = vadd.f32 %v906, %v911
        %v917 = vcombine.low %v913, %v914
        %v919 = vadd.f32 %v312, %v917
        %920 = vst [vmem:[%s271] sm:$0xff] %v919
        %s921 = sand.u32 %s181, 1
        %s922 = scalar_lea.sflag [#allocation5], %s921
        %s923 = sand.u32 %s181, 1
        %s924 = smul.addr %s923, 8
        %s925 = scalar_lea.vmem [#allocation4], %s924
        // Predicated region
        $region49: #{tpu_custom_call.1} parent=47 // pred_check
          %p926 = pneg %p191
        $region50: #{tpu_custom_call.1} parent=47 // pred_check_branch
          %928 = sbr.rel (%p926) target = $region52
        $region51: #{tpu_custom_call.1} parent=47 // pred_region
          %s930 = ssub.s32 128, 128
          %931 = vsyncadd %s922, %s930
          %s932 = smul.addr %s21, 2
          %s933 = smul.addr %s932, 64
          %s934 = scalar_lea.hbm %s7, %s933
          %s936 = sshll.u32 %s925, 4
          %s937 = int_to_ptr.vmem [resolvable:$true] %s936
          %939 = dma.vmem_to_hbm [thread:$0]  %s937, 128, %s934, %s922
        $region52: #{tpu_custom_call.1} parent=47 // pred_fallthru
          _
      $region48: #{tpu_custom_call.1} parent=5 // pred_fallthru
        _
      %p940 = scmp.le.s32.totalorder 2, %s16
      // Predicated region
      $region53: #{tpu_custom_call.1} parent=5 // pred_check
        %p941 = pneg %p940
      $region54: #{tpu_custom_call.1} parent=5 // pred_check_branch
        %943 = sbr.rel (%p941) target = $region56
      $region55: #{tpu_custom_call.1} parent=5 // pred_region
        %s944 = ssub.s32 %s16, 2
        // Predicated region
        $region57: #{tpu_custom_call.1} parent=55 // pred_check
          %p945 = pneg %p197
        $region58: #{tpu_custom_call.1} parent=55 // pred_check_branch
          %947 = sbr.rel (%p945) target = $region60
        $region59: #{tpu_custom_call.1} parent=55 // pred_region
          %s948 = sand.u32 %s182, 1
          %s949 = scalar_lea.sflag [#allocation5], %s948
          %s950 = sand.u32 %s182, 1
          %s951 = smul.addr %s950, 8
          %s952 = scalar_lea.vmem [#allocation4], %s951
          %953 = dma.done %s949, 128
        $region60: #{tpu_custom_call.1} parent=55 // pred_fallthru
          _
      $region56: #{tpu_custom_call.1} parent=5 // pred_fallthru
        _
    $region6: #{tpu_custom_call.1} parent=1 // loop_footer
      %s20 = sadd.s32 1, %s16
    $region7: #{tpu_custom_call.1} parent=1 // loop_footer_branch
      %15 = sbr.rel target = $region3
    $region8: #{tpu_custom_call.1} parent=1 // loop_exit
      _
    %954 = vsyncpa [#allocation5], 1
    %s955 = scalar_lea.sflag [#allocation5], 1
    %956 = vsyncpa %s955, 1

</llo_original>
